<compile_context>
chip_gen: v7x
topology: tpu7x:2x2x1
jax: 0.10.0
libtpu: 0.0.40
codegen_flags: <defaults>
</compile_context>

<pallas_src>
import functools

import numpy as np
import jax
import jax.numpy as jnp
from jax import lax
from jax.experimental import pallas as pl
from jax.experimental.pallas import tpu as pltpu


# ----------------------------------------------------------------- filters ---
_FILTER_TAPS = {
    # filter = outer(kv, kh):  conv2d(x, filter, padding=1)
    #   = (kv applied along H with zero pad) o (kh applied along W with zero pad)
    'sobel':   {'h': ((1.0, 2.0, 1.0), (-1.0, 0.0, 1.0)),
                'w': ((-1.0, 0.0, 1.0), (1.0, 2.0, 1.0))},
    'prewitt': {'h': ((1.0, 1.0, 1.0), (-1.0, 0.0, 1.0)),
                'w': ((-1.0, 0.0, 1.0), (1.0, 1.0, 1.0))},
}


def _combine(taps, a_minus, a_center, a_plus):
    """sum_k taps[k] * a_k, with 0 / +-1 taps folded away at trace time."""
    out = None
    for c, a in zip(taps, (a_minus, a_center, a_plus)):
        if c == 0.0:
            continue
        term = a if c == 1.0 else (-a if c == -1.0 else c * a)
        out = term if out is None else out + term
    return out


# ------------------------------------------------------------------- kernel ---
def _make_gdl_kernel(taps):
    kv_h, kh_h = taps['h']
    kv_w, kh_w = taps['w']

    def kernel(rowm_ref, colm_ref, pred_ref, target_ref, seg_ref, out_ref):
        pred = pred_ref[...].astype(jnp.float32)      # cast in-kernel (native-width DMA)
        target = target_ref[...].astype(jnp.float32)
        shape = pred.shape
        R, C = shape

        # Grid-invariant zero-pad validity masks, precomputed on host; broadcast once.
        rm_m = jnp.broadcast_to(rowm_ref[:, 0:1], shape)   # valid to read row r-1
        rm_p = jnp.broadcast_to(rowm_ref[:, 1:2], shape)   # valid to read row r+1
        cm_m = jnp.broadcast_to(colm_ref[0:1, :], shape)   # valid to read col c-1
        cm_p = jnp.broadcast_to(colm_ref[1:2, :], shape)   # valid to read col c+1

        # pltpu.roll follows jnp.roll semantics: out[i] = x[(i - shift) % n].
        def sh_h_m(x):   # out[r] = x[r-1], zero-padded
            return pltpu.roll(x, shift=1, axis=0) * rm_m

        def sh_h_p(x):   # out[r] = x[r+1]
            return pltpu.roll(x, shift=R - 1, axis=0) * rm_p

        def sh_w_m(x):   # out[c] = x[c-1]
            return pltpu.roll(x, shift=1, axis=1) * cm_m

        def sh_w_p(x):   # out[c] = x[c+1]
            return pltpu.roll(x, shift=C - 1, axis=1) * cm_p

        def grads(x):
            # Shared lane-direction shifts, reused by both filters.
            xl = sh_w_m(x)
            xr = sh_w_p(x)
            g_h = _combine(kh_h, xl, x, xr)    # W stage of filter_h
            g_w = _combine(kh_w, xl, x, xr)    # W stage of filter_w
            gh = _combine(kv_h, sh_h_m(g_h), g_h, sh_h_p(g_h))   # H stage
            gw = _combine(kv_w, sh_h_m(g_w), g_w, sh_h_p(g_w))
            return jnp.abs(gh), jnp.abs(gw)

        pgh, pgw = grads(pred)
        tgh, tgw = grads(target)

        dh = tgh - pgh
        dw = tgw - pgw
        d2 = dh * dh + dw * dw
        # attn = round(sigmoid(seg)) == 1{seg > 0}; attn in {0,1} so it commutes with
        # the squaring and is applied exactly once.
        # (Differs from torch only for |seg| below f32 sigmoid resolution ~1e-7.)
        masked = jnp.where(seg_ref[...] > 0, d2, 0.0)

        out_ref[0, 0] = jnp.sum(masked)   # per-block partial sum

    return kernel


# --------------------------------------------------------------- block plan ---
def _vmem_capacity_bytes():
    try:
        info = pltpu.get_tpu_info()
    except Exception:
        return None
    return getattr(info, "vmem_capacity_bytes", None)


def _choose_tb(B, legal, max_tb_budget):
    """Largest legal divisor of B under budget, preferring >=4 (then >=2) grid steps."""
    divs = [d for d in range(1, B + 1) if B % d == 0]
    legal_divs = [d for d in divs if legal(d)]
    if not legal_divs:
        return None
    in_budget = [d for d in legal_divs if d <= max_tb_budget]
    pool = in_budget if in_budget else [min(legal_divs)]
    for min_blocks in (4, 2, 1):
        cands = [d for d in pool if B // d >= min_blocks]
        if cands:
            return max(cands)
    return max(pool)


def _plan(B, H, W):
    cap = _vmem_capacity_bytes() or (64 * 1024 * 1024)   # conservative fallback
    big_vmem = cap >= 100 * 1024 * 1024                   # v5e / v6e class
    budget = (2 << 20) if big_vmem else (1 << 20)         # bytes per input block
    vmem_limit = (64 << 20) if big_vmem else (32 << 20)
    max_tb_budget = max(1, budget // max(1, H * W * 4))

    if W % 128 == 0:
        # Lane-dense W: keep [B*H, W], tile the batch on sublanes (no host transpose).
        legal_v = lambda tb: (tb * H) % 8 == 0 or tb == B
        tb = _choose_tb(B, legal_v, max_tb_budget)
        # Don't accept a single huge full-tensor block forced by the sublane rule.
        if tb is not None and not (tb == B and B > 1 and B > max_tb_budget):
            return {'layout': 'v', 'tb': tb, 'vmem_limit': vmem_limit}

    # Lane-sparse W (or vertical plan rejected): stack images on the lane axis.
    legal_h = lambda tb: (tb * W) % 128 == 0 or tb == B
    tb = _choose_tb(B, legal_h, max_tb_budget)
    return {'layout': 'h', 'tb': tb, 'vmem_limit': vmem_limit}


# ------------------------------------------------------------------ wrapper ---
def gradient_difference_loss_w_attention(pred, target, seg_output,
                                         filter_type='sobel'):
    """pred/target/seg_output: [B, 1, H, W] (NCHW, single channel)."""
    if filter_type not in _FILTER_TAPS:
        raise ValueError(f'Unsupported filter type: {filter_type}')
    B, C, H, W = pred.shape
    assert C == 1, "GradientDifferenceLoss_w_Attention uses single-channel 3x3 filters"

    plan = _plan(B, H, W)
    tb = plan['tb']
    nblk = B // tb

    if plan['layout'] == 'v':
        # [B*H, W]: W on lanes, image rows stacked on sublanes; grid over batches.
        def pack(x):
            return x.reshape(B * H, W)
        R, Cb = tb * H, W
        in_map = lambda b: (b, 0)
        hh = np.arange(R) % H
        ww = np.arange(Cb)
    else:
        # [H, B*W]: images side-by-side on the lane axis; grid over lane chunks.
        def pack(x):
            return jnp.transpose(x.reshape(B, H, W), (1, 0, 2)).reshape(H, B * W)
        R, Cb = H, tb * W
        in_map = lambda b: (0, b)
        hh = np.arange(R)
        ww = np.arange(Cb) % W

    # Grid-invariant boundary masks (f32 so they multiply straight into the FMAs).
    row_mask = np.stack([hh >= 1, hh <= H - 2], axis=1).astype(np.float32)   # [R, 2]
    col_mask = np.stack([ww >= 1, ww <= W - 2], axis=0).astype(np.float32)   # [2, Cb]

    p, t, s = pack(pred), pack(target), pack(seg_output)

    kernel = _make_gdl_kernel(_FILTER_TAPS[filter_type])

    data_spec = pl.BlockSpec((R, Cb), in_map)
    rowm_spec = pl.BlockSpec((R, 2), lambda b: (0, 0))
    colm_spec = pl.BlockSpec((2, Cb), lambda b: (0, 0))

    partials = pl.pallas_call(
        kernel,
        out_shape=jax.ShapeDtypeStruct((nblk, 1), jnp.float32),
        grid=(nblk,),
        in_specs=[rowm_spec, colm_spec, data_spec, data_spec, data_spec],
        out_specs=pl.BlockSpec((1, 1), lambda b: (b, 0),
                               memory_space=pltpu.MemorySpace.SMEM),
        compiler_params=pltpu.CompilerParams(
            dimension_semantics=("parallel",),
            vmem_limit_bytes=plan['vmem_limit']),
    )(jnp.asarray(row_mask), jnp.asarray(col_mask), p, t, s)

    # mean(.^2) over B*H*W elements for each of the two gradient directions.
    return jnp.sum(partials) / jnp.float32(B * H * W)


# ---------------------------------------------------------------- reference ---
def _reference_loss(pred, target, seg_output, filter_type='sobel'):
    if filter_type == 'sobel':
        fh = jnp.array([[-1, 0, 1], [-2, 0, 2], [-1, 0, 1]], jnp.float32)
        fw = jnp.array([[-1, -2, -1], [0, 0, 0], [1, 2, 1]], jnp.float32)
    else:
        fh = jnp.array([[-1, 0, 1], [-1, 0, 1], [-1, 0, 1]], jnp.float32)
        fw = jnp.array([[-1, -1, -1], [0, 0, 0], [1, 1, 1]], jnp.float32)
    fh = fh[None, None]
    fw = fw[None, None]

    def conv(x, f):
        return lax.conv_general_dilated(
            x, f, window_strides=(1, 1), padding=[(1, 1), (1, 1)],
            dimension_numbers=('NCHW', 'OIHW', 'NCHW'))

    attn = jnp.round(jax.nn.sigmoid(seg_output))
    pgh = attn * jnp.abs(conv(pred, fh))
    pgw = attn * jnp.abs(conv(pred, fw))
    tgh = attn * jnp.abs(conv(target, fh))
    tgw = attn * jnp.abs(conv(target, fw))
    return jnp.mean((tgh - pgh) ** 2) + jnp.mean((tgw - pgw) ** 2)


# --------------------------------------------------------------------- main ---
if __name__ == "__main__":
    key = jax.random.PRNGKey(0)

    # (shape, filter): lane-sparse W exercises the [H, B*W] layout,
    # W=128 exercises the [B*H, W] layout with a real multi-step grid.
    configs = [((2, 1, 16, 16), 'sobel'),
               ((2, 1, 16, 16), 'prewitt'),
               ((4, 1, 8, 128), 'sobel')]

    for shape, ftype in configs:
        key, k1, k2, k3 = jax.random.split(key, 4)
        pred = jax.random.normal(k1, shape, jnp.float32)
        target = jax.random.normal(k2, shape, jnp.float32)
        seg_output = jax.random.normal(k3, shape, jnp.float32)

        loss_fn = jax.jit(functools.partial(gradient_difference_loss_w_attention,
                                            filter_type=ftype))
        loss = jax.block_until_ready(loss_fn(pred, target, seg_output))
        ref = jax.block_until_ready(_reference_loss(pred, target, seg_output, ftype))
        np.testing.assert_allclose(np.asarray(loss), np.asarray(ref),
                                   rtol=1e-4, atol=1e-5)

    print("KERNEL_OK")
</pallas_src>

<mosaic_0001>
module attributes {stable_mosaic.version = 11 : i64} {
  func.func @kernel(%arg0: i32, %arg1: memref<16x2xf32, #tpu.memory_space<vmem>>, %arg2: memref<2x32xf32, #tpu.memory_space<vmem>>, %arg3: memref<16x32xf32, #tpu.memory_space<vmem>>, %arg4: memref<16x32xf32, #tpu.memory_space<vmem>>, %arg5: memref<16x32xf32, #tpu.memory_space<vmem>>, %arg6: memref<1x1xf32, #tpu.memory_space<smem>>) attributes {dimension_semantics = [#tpu.dimension_semantics<parallel>], iteration_bounds = array<i64: 1>, scalar_prefetch = 0 : i64, scratch_operands = 0 : i64, tpu.core_type = #tpu.core_type<tc>, window_params = [{pipeline_mode = #tpu.pipeline_mode<synchronous>, transform_indices = @transform_0, window_bounds = array<i64: 16, 2>}, {pipeline_mode = #tpu.pipeline_mode<synchronous>, transform_indices = @transform_1, window_bounds = array<i64: 2, 32>}, {transform_indices = @transform_2, window_bounds = array<i64: 16, 32>}, {transform_indices = @transform_3, window_bounds = array<i64: 16, 32>}, {transform_indices = @transform_4, window_bounds = array<i64: 16, 32>}, {transform_indices = @transform_5, window_bounds = array<i64: 1, 1>}]} {
    %c0 = arith.constant 0 : index
    %c0_0 = arith.constant 0 : index
    %0 = vector.load %arg3[%c0, %c0_0] : memref<16x32xf32, #tpu.memory_space<vmem>>, vector<16x32xf32>
    %c0_1 = arith.constant 0 : index
    %c0_2 = arith.constant 0 : index
    %1 = vector.load %arg4[%c0_1, %c0_2] : memref<16x32xf32, #tpu.memory_space<vmem>>, vector<16x32xf32>
    %c0_3 = arith.constant 0 : index
    %c0_4 = arith.constant 0 : index
    %2 = vector.load %arg1[%c0_3, %c0_4] : memref<16x2xf32, #tpu.memory_space<vmem>>, vector<16x1xf32>
    %3 = vector.shape_cast %2 : vector<16x1xf32> to vector<16x1xf32>
    %4 = vector.broadcast %3 : vector<16x1xf32> to vector<16x32xf32>
    %c0_5 = arith.constant 0 : index
    %c1 = arith.constant 1 : index
    %5 = vector.load %arg1[%c0_5, %c1] : memref<16x2xf32, #tpu.memory_space<vmem>>, vector<16x1xf32>
    %6 = vector.shape_cast %5 : vector<16x1xf32> to vector<16x1xf32>
    %7 = vector.broadcast %6 : vector<16x1xf32> to vector<16x32xf32>
    %c0_6 = arith.constant 0 : index
    %c0_7 = arith.constant 0 : index
    %8 = vector.load %arg2[%c0_6, %c0_7] : memref<2x32xf32, #tpu.memory_space<vmem>>, vector<1x32xf32>
    %9 = vector.shape_cast %8 : vector<1x32xf32> to vector<1x32xf32>
    %10 = vector.broadcast %9 : vector<1x32xf32> to vector<16x32xf32>
    %c1_8 = arith.constant 1 : index
    %c0_9 = arith.constant 0 : index
    %11 = vector.load %arg2[%c1_8, %c0_9] : memref<2x32xf32, #tpu.memory_space<vmem>>, vector<1x32xf32>
    %12 = vector.shape_cast %11 : vector<1x32xf32> to vector<1x32xf32>
    %13 = vector.broadcast %12 : vector<1x32xf32> to vector<16x32xf32>
    %c1_i32 = arith.constant 1 : i32
    %14 = tpu.dynamic_rotate %0 by %c1_i32 dim 1 : vector<16x32xf32>, i32 -> vector<16x32xf32>
    %15 = arith.mulf %14, %10 : vector<16x32xf32>
    %c31_i32 = arith.constant 31 : i32
    %16 = tpu.dynamic_rotate %0 by %c31_i32 dim 1 : vector<16x32xf32>, i32 -> vector<16x32xf32>
    %17 = arith.mulf %16, %13 : vector<16x32xf32>
    %cst = arith.constant 0.000000e+00 : f32
    %18 = vector.broadcast %cst : f32 to vector<16x32xf32>
    %19 = arith.subf %18, %15 : vector<16x32xf32>
    %20 = arith.addf %19, %17 : vector<16x32xf32>
    %cst_10 = arith.constant 2.000000e+00 : f32
    %21 = vector.broadcast %cst_10 : f32 to vector<16x32xf32>
    %22 = arith.mulf %21, %0 : vector<16x32xf32>
    %23 = arith.addf %15, %22 : vector<16x32xf32>
    %24 = arith.addf %23, %17 : vector<16x32xf32>
    %c1_i32_11 = arith.constant 1 : i32
    %25 = tpu.dynamic_rotate %20 by %c1_i32_11 dim 0 : vector<16x32xf32>, i32 -> vector<16x32xf32>
    %26 = arith.mulf %25, %4 : vector<16x32xf32>
    %c15_i32 = arith.constant 15 : i32
    %27 = tpu.dynamic_rotate %20 by %c15_i32 dim 0 : vector<16x32xf32>, i32 -> vector<16x32xf32>
    %28 = arith.mulf %27, %7 : vector<16x32xf32>
    %cst_12 = arith.constant 2.000000e+00 : f32
    %29 = vector.broadcast %cst_12 : f32 to vector<16x32xf32>
    %30 = arith.mulf %29, %20 : vector<16x32xf32>
    %31 = arith.addf %26, %30 : vector<16x32xf32>
    %32 = arith.addf %31, %28 : vector<16x32xf32>
    %c1_i32_13 = arith.constant 1 : i32
    %33 = tpu.dynamic_rotate %24 by %c1_i32_13 dim 0 : vector<16x32xf32>, i32 -> vector<16x32xf32>
    %34 = arith.mulf %33, %4 : vector<16x32xf32>
    %c15_i32_14 = arith.constant 15 : i32
    %35 = tpu.dynamic_rotate %24 by %c15_i32_14 dim 0 : vector<16x32xf32>, i32 -> vector<16x32xf32>
    %36 = arith.mulf %35, %7 : vector<16x32xf32>
    %cst_15 = arith.constant 0.000000e+00 : f32
    %37 = vector.broadcast %cst_15 : f32 to vector<16x32xf32>
    %38 = arith.subf %37, %34 : vector<16x32xf32>
    %39 = arith.addf %38, %36 : vector<16x32xf32>
    %40 = math.absf %32 : vector<16x32xf32>
    %41 = math.absf %39 : vector<16x32xf32>
    %c1_i32_16 = arith.constant 1 : i32
    %42 = tpu.dynamic_rotate %1 by %c1_i32_16 dim 1 : vector<16x32xf32>, i32 -> vector<16x32xf32>
    %43 = arith.mulf %42, %10 : vector<16x32xf32>
    %c31_i32_17 = arith.constant 31 : i32
    %44 = tpu.dynamic_rotate %1 by %c31_i32_17 dim 1 : vector<16x32xf32>, i32 -> vector<16x32xf32>
    %45 = arith.mulf %44, %13 : vector<16x32xf32>
    %cst_18 = arith.constant 0.000000e+00 : f32
    %46 = vector.broadcast %cst_18 : f32 to vector<16x32xf32>
    %47 = arith.subf %46, %43 : vector<16x32xf32>
    %48 = arith.addf %47, %45 : vector<16x32xf32>
    %cst_19 = arith.constant 2.000000e+00 : f32
    %49 = vector.broadcast %cst_19 : f32 to vector<16x32xf32>
    %50 = arith.mulf %49, %1 : vector<16x32xf32>
    %51 = arith.addf %43, %50 : vector<16x32xf32>
    %52 = arith.addf %51, %45 : vector<16x32xf32>
    %c1_i32_20 = arith.constant 1 : i32
    %53 = tpu.dynamic_rotate %48 by %c1_i32_20 dim 0 : vector<16x32xf32>, i32 -> vector<16x32xf32>
    %54 = arith.mulf %53, %4 : vector<16x32xf32>
    %c15_i32_21 = arith.constant 15 : i32
    %55 = tpu.dynamic_rotate %48 by %c15_i32_21 dim 0 : vector<16x32xf32>, i32 -> vector<16x32xf32>
    %56 = arith.mulf %55, %7 : vector<16x32xf32>
    %cst_22 = arith.constant 2.000000e+00 : f32
    %57 = vector.broadcast %cst_22 : f32 to vector<16x32xf32>
    %58 = arith.mulf %57, %48 : vector<16x32xf32>
    %59 = arith.addf %54, %58 : vector<16x32xf32>
    %60 = arith.addf %59, %56 : vector<16x32xf32>
    %c1_i32_23 = arith.constant 1 : i32
    %61 = tpu.dynamic_rotate %52 by %c1_i32_23 dim 0 : vector<16x32xf32>, i32 -> vector<16x32xf32>
    %62 = arith.mulf %61, %4 : vector<16x32xf32>
    %c15_i32_24 = arith.constant 15 : i32
    %63 = tpu.dynamic_rotate %52 by %c15_i32_24 dim 0 : vector<16x32xf32>, i32 -> vector<16x32xf32>
    %64 = arith.mulf %63, %7 : vector<16x32xf32>
    %cst_25 = arith.constant 0.000000e+00 : f32
    %65 = vector.broadcast %cst_25 : f32 to vector<16x32xf32>
    %66 = arith.subf %65, %62 : vector<16x32xf32>
    %67 = arith.addf %66, %64 : vector<16x32xf32>
    %68 = math.absf %60 : vector<16x32xf32>
    %69 = math.absf %67 : vector<16x32xf32>
    %70 = arith.subf %68, %40 : vector<16x32xf32>
    %71 = arith.subf %69, %41 : vector<16x32xf32>
    %72 = arith.mulf %70, %70 : vector<16x32xf32>
    %73 = arith.mulf %71, %71 : vector<16x32xf32>
    %74 = arith.addf %72, %73 : vector<16x32xf32>
    %c0_26 = arith.constant 0 : index
    %c0_27 = arith.constant 0 : index
    %75 = vector.load %arg5[%c0_26, %c0_27] : memref<16x32xf32, #tpu.memory_space<vmem>>, vector<16x32xf32>
    %cst_28 = arith.constant 0.000000e+00 : f32
    %76 = vector.broadcast %cst_28 : f32 to vector<16x32xf32>
    %77 = arith.cmpf ogt, %75, %76 : vector<16x32xf32>
    %cst_29 = arith.constant 0.000000e+00 : f32
    %78 = vector.broadcast %cst_29 : f32 to vector<16x32xf32>
    %79 = arith.select %77, %74, %78 : vector<16x32xi1>, vector<16x32xf32>
    %80 = vector.shape_cast %79 : vector<16x32xf32> to vector<1x16x32xf32>
    %cst_30 = arith.constant dense<0.000000e+00> : vector<1xf32>
    %81 = vector.multi_reduction <add>, %80, %cst_30 [1, 2] : vector<1x16x32xf32> to vector<1xf32>
    %82 = vector.shape_cast %81 : vector<1xf32> to vector<1x1x1xf32>
    %83 = vector.extract %82[0, 0, 0] : f32 from vector<1x1x1xf32>
    %c0_31 = arith.constant 0 : index
    %c0_32 = arith.constant 0 : index
    %84 = memref.load %arg6[%c0_31, %c0_32] : memref<1x1xf32, #tpu.memory_space<smem>>
    memref.store %83, %arg6[%c0_31, %c0_32] : memref<1x1xf32, #tpu.memory_space<smem>>
    return
  }
  func.func @transform_0(%arg0: i32) -> (i32, i32) {
    %c0_i32 = arith.constant 0 : i32
    %c0_i32_0 = arith.constant 0 : i32
    %c0_i32_1 = arith.constant 0 : i32
    return %c0_i32, %c0_i32_0 : i32, i32
  }
  func.func @transform_1(%arg0: i32) -> (i32, i32) {
    %c0_i32 = arith.constant 0 : i32
    %c0_i32_0 = arith.constant 0 : i32
    %c0_i32_1 = arith.constant 0 : i32
    return %c0_i32, %c0_i32_0 : i32, i32
  }
  func.func @transform_2(%arg0: i32) -> (i32, i32) {
    %c0_i32 = arith.constant 0 : i32
    %c0_i32_0 = arith.constant 0 : i32
    return %c0_i32, %arg0 : i32, i32
  }
  func.func @transform_3(%arg0: i32) -> (i32, i32) {
    %c0_i32 = arith.constant 0 : i32
    %c0_i32_0 = arith.constant 0 : i32
    return %c0_i32, %arg0 : i32, i32
  }
  func.func @transform_4(%arg0: i32) -> (i32, i32) {
    %c0_i32 = arith.constant 0 : i32
    %c0_i32_0 = arith.constant 0 : i32
    return %c0_i32, %arg0 : i32, i32
  }
  func.func @transform_5(%arg0: i32) -> (i32, i32) {
    %c0_i32 = arith.constant 0 : i32
    %c0_i32_0 = arith.constant 0 : i32
    return %arg0, %c0_i32 : i32, i32
  }
}

</mosaic_0001>

<llo_original>
// kernel: gradient_difference_loss_w_attention.1
$region0: #{gradient_difference_loss_w_attention.1}
  #allocation0 [shape = 'u32[]', space=smem, size = 0x4, offset = 0x4, fixed_abs, tag = 'smem constant byte address 0x4 - core index']
  #allocation1 [shape = 'u32[144,128]{1,0:T(1,128)}', space=vmem, size = 0x12000, scoped, tag = 'internal scratch']
  %s0 = inlined_call_operand.vmem [shape: f32[16,2], index: 0, kind: input, shape index: {}]
  %s1 = inlined_call_operand.vmem [shape: f32[2,32], index: 1, kind: input, shape index: {}]
  %s2 = inlined_call_operand.vmem [shape: f32[16,32], index: 2, kind: input, shape index: {}]
  %s3 = inlined_call_operand.vmem [shape: f32[16,32], index: 3, kind: input, shape index: {}]
  %s4 = inlined_call_operand.vmem [shape: f32[16,32], index: 4, kind: input, shape index: {}]
  %s5 = inlined_call_operand.hbm [shape: f32[1,1], index: 5, kind: output, shape index: {}]
  %s6 = sld [smem:[#allocation0]]
  $region30: #{gradient_difference_loss_w_attention.1} parent=0
    _
  %s8 = ssub.s32 1, %s6
  %s9 = scalar_select 0, %s8, %s6
  $region1: #{gradient_difference_loss_w_attention.1} parent=0
    #allocation2 [shape = 'u8[512]{0}', space=smem, size = 0x200, scoped, tag = 'output window, operand 0, single buffered']
    #allocation3 [shape = 's32[1]{0}', space=sflag, size = 0x4, scoped, tag = 'scoped memory for gradient_difference_loss_w_attention.1']
    %10 = vsyncpa [#allocation3], 0
    // Predicated region
    $region2: #{gradient_difference_loss_w_attention.1} parent=1 // pred_check
      _
    $region3: #{gradient_difference_loss_w_attention.1} parent=1 // pred_check_branch
      %12 = sbr.rel (0) target = $region5
    $region4: #{gradient_difference_loss_w_attention.1} parent=1 // pred_region
      _
    $region5: #{gradient_difference_loss_w_attention.1} parent=1 // pred_fallthru
      _
    // Predicated region
    $region6: #{gradient_difference_loss_w_attention.1} parent=1 // pred_check
      _
    $region7: #{gradient_difference_loss_w_attention.1} parent=1 // pred_check_branch
      %14 = sbr.rel (0) target = $region9
    $region8: #{gradient_difference_loss_w_attention.1} parent=1 // pred_region
      _
    $region9: #{gradient_difference_loss_w_attention.1} parent=1 // pred_fallthru
      _
    // Predicated region
    $region10: #{gradient_difference_loss_w_attention.1} parent=1 // pred_check
      _
    $region11: #{gradient_difference_loss_w_attention.1} parent=1 // pred_check_branch
      %16 = sbr.rel (0) target = $region13
    $region12: #{gradient_difference_loss_w_attention.1} parent=1 // pred_region
      _
    $region13: #{gradient_difference_loss_w_attention.1} parent=1 // pred_fallthru
      _
    // Predicated region
    $region14: #{gradient_difference_loss_w_attention.1} parent=1 // pred_check
      _
    $region15: #{gradient_difference_loss_w_attention.1} parent=1 // pred_check_branch
      %18 = sbr.rel (0) target = $region17
    $region16: #{gradient_difference_loss_w_attention.1} parent=1 // pred_region
      _
    $region17: #{gradient_difference_loss_w_attention.1} parent=1 // pred_fallthru
      _
    // Predicated region
    $region18: #{gradient_difference_loss_w_attention.1} parent=1 // pred_check
      _
    $region19: #{gradient_difference_loss_w_attention.1} parent=1 // pred_check_branch
      %20 = sbr.rel (0) target = $region21
    $region20: #{gradient_difference_loss_w_attention.1} parent=1 // pred_region
      _
    $region21: #{gradient_difference_loss_w_attention.1} parent=1 // pred_fallthru
      _
    %v21 = vld [vmem:[%s2] sm:$0xff]
    %v22 = vld [vmem:[%s2 + $0x8] sm:$0xff]
    %v23 = vld [vmem:[%s3] sm:$0xff]
    %v24 = vld [vmem:[%s3 + $0x8] sm:$0xff]
    %v25 = vld [vmem:[%s0] sm:$0xff]
    %v26 = vld [vmem:[%s0 + $0x8] sm:$0xff]
    %28 = vset.pattern.permute.xlu0 0
    %29 = vperm.xlu0 %28, %v25
    %v30 = vpop.permute.xlu0 %29
    %33 = vset.pattern.permute.xlu0 0
    %34 = vperm.xlu0 %33, %v26
    %v35 = vpop.permute.xlu0 %34
    %37 = vset.pattern.permute.xlu0 1
    %38 = vperm.xlu0 %37, %v25
    %v39 = vpop.permute.xlu0 %38
    %41 = vset.pattern.permute.xlu0 1
    %42 = vperm.xlu0 %41, %v26
    %v43 = vpop.permute.xlu0 %42
    %v45 = vld [vmem:[%s1] sm:$0x1]
    %v46 = vlaneseq
    %v47 = vshrl.u32 %v46, 7
    %v48 = vsub.s32 0, %v47
    %v49 = vrot.slane %v45, %v48
    %v50 = vld [vmem:[%s1 + $0x1] sm:$0x1]
    %v51 = vlaneseq
    %v52 = vshrl.u32 %v51, 7
    %v53 = vsub.s32 0, %v52
    %v54 = vrot.slane %v50, %v53
    %vm55 = vcmask 1047808
    %56 = vrot.lane.b32.xlu0 %v21, 32
    %v57 = vpop.permute.xlu0 %56
    %v58 = vsel %vm55, %v57, %v21
    %59 = vrot.lane.b32.xlu0 %v22, 32
    %v60 = vpop.permute.xlu0 %59
    %v61 = vsel %vm55, %v60, %v22
    %62 = vrot.lane.b32.xlu0 %v58, 32
    %v63 = vpop.permute.xlu0 %62
    %64 = vrot.lane.b32.xlu0 %v61, 32
    %v65 = vpop.permute.xlu0 %64
    %v66 = vsel %vm55, %v63, %v21
    %v67 = vsel %vm55, %v65, %v22
    %69 = vrot.lane.b32.xlu0 %v49, 31
    %v70 = vpop.permute.xlu0 %69
    %v72 = vmul.f32 %v66, %v70
    %v73 = vmul.f32 %v67, %v70
    %75 = vrot.lane.b32.xlu0 %v54, 1
    %v76 = vpop.permute.xlu0 %75
    %v78 = vmul.f32 %v66, %v76
    %v79 = vmul.f32 %v67, %v76
    %v80 = vsub.f32 0.0, %v72
    %v81 = vsub.f32 0.0, %v73
    %84 = vrot.lane.b32.xlu0 %v78, 30
    %v85 = vpop.permute.xlu0 %84
    %86 = vrot.lane.b32.xlu0 %v79, 30
    %v87 = vpop.permute.xlu0 %86
    %v90 = vadd.f32 %v80, %v85
    %v91 = vadd.f32 %v81, %v87
    %v92 = vmul.f32 %v21, 2.0
    %v93 = vmul.f32 %v22, 2.0
    %96 = vrot.lane.b32.xlu0 %v92, 31
    %v97 = vpop.permute.xlu0 %96
    %98 = vrot.lane.b32.xlu0 %v93, 31
    %v99 = vpop.permute.xlu0 %98
    %v102 = vadd.f32 %v72, %v97
    %v103 = vadd.f32 %v73, %v99
    %v104 = vadd.f32 %v102, %v85
    %v105 = vadd.f32 %v103, %v87
    %108 = vrot.lane.b32.xlu0 %v90, 97
    %v109 = vpop.permute.xlu0 %108
    %110 = vrot.lane.b32.xlu0 %v91, 97
    %v111 = vpop.permute.xlu0 %110
    %v114 = vrot.slane %v109, 7
    %v115 = vrot.slane %v111, 7
    %v116 = vlaneseq
    %v117 = vshrl.u32 %v116, 7
    %vm118 = vcmp.lt.s32.totalorder %v117, 1
    %v119 = vsel %vm118, %v114, %v115
    %v120 = vsel %vm118, %v115, %v114
    %v121 = vmul.f32 %v120, %v30
    %v122 = vmul.f32 %v119, %v35
    %v123 = vrot.slane %v109, 1
    %v124 = vrot.slane %v111, 1
    %vm125 = vcmp.lt.s32.totalorder %v117, 7
    %v126 = vsel %vm125, %v123, %v124
    %v127 = vsel %vm125, %v124, %v123
    %v128 = vmul.f32 %v126, %v39
    %v129 = vmul.f32 %v127, %v43
    %v130 = vmul.f32 %v90, 2.0
    %v131 = vmul.f32 %v91, 2.0
    %134 = vrot.lane.b32.xlu0 %v130, 97
    %v135 = vpop.permute.xlu0 %134
    %136 = vrot.lane.b32.xlu0 %v131, 97
    %v137 = vpop.permute.xlu0 %136
    %v140 = vadd.f32 %v121, %v135
    %v141 = vadd.f32 %v122, %v137
    %v142 = vadd.f32 %v140, %v128
    %v143 = vadd.f32 %v141, %v129
    %146 = vrot.lane.b32.xlu0 %v104, 97
    %v147 = vpop.permute.xlu0 %146
    %148 = vrot.lane.b32.xlu0 %v105, 97
    %v149 = vpop.permute.xlu0 %148
    %v152 = vrot.slane %v147, 7
    %v153 = vrot.slane %v149, 7
    %v154 = vsel %vm118, %v152, %v153
    %v155 = vsel %vm118, %v153, %v152
    %v156 = vmul.f32 %v155, %v30
    %v157 = vmul.f32 %v154, %v35
    %v158 = vrot.slane %v147, 1
    %v159 = vrot.slane %v149, 1
    %v160 = vsel %vm125, %v158, %v159
    %v161 = vsel %vm125, %v159, %v158
    %v162 = vmul.f32 %v160, %v39
    %v163 = vmul.f32 %v161, %v43
    %v164 = vsub.f32 0.0, %v156
    %v165 = vsub.f32 0.0, %v157
    %v166 = vadd.f32 %v164, %v162
    %v167 = vadd.f32 %v165, %v163
    %v168 = vand.u32 2147483647, %v142
    %v169 = vand.u32 2147483647, %v143
    %v170 = vand.u32 2147483647, %v166
    %v171 = vand.u32 2147483647, %v167
    %172 = vrot.lane.b32.xlu0 %v23, 32
    %v173 = vpop.permute.xlu0 %172
    %v174 = vsel %vm55, %v173, %v23
    %175 = vrot.lane.b32.xlu0 %v24, 32
    %v176 = vpop.permute.xlu0 %175
    %v177 = vsel %vm55, %v176, %v24
    %178 = vrot.lane.b32.xlu0 %v174, 32
    %v179 = vpop.permute.xlu0 %178
    %180 = vrot.lane.b32.xlu0 %v177, 32
    %v181 = vpop.permute.xlu0 %180
    %v182 = vsel %vm55, %v179, %v23
    %v183 = vsel %vm55, %v181, %v24
    %v184 = vmul.f32 %v182, %v70
    %v185 = vmul.f32 %v183, %v70
    %v186 = vmul.f32 %v182, %v76
    %v187 = vmul.f32 %v183, %v76
    %v188 = vsub.f32 0.0, %v184
    %v189 = vsub.f32 0.0, %v185
    %192 = vrot.lane.b32.xlu0 %v186, 30
    %v193 = vpop.permute.xlu0 %192
    %194 = vrot.lane.b32.xlu0 %v187, 30
    %v195 = vpop.permute.xlu0 %194
    %v198 = vadd.f32 %v188, %v193
    %v199 = vadd.f32 %v189, %v195
    %v200 = vmul.f32 %v23, 2.0
    %v201 = vmul.f32 %v24, 2.0
    %204 = vrot.lane.b32.xlu0 %v200, 31
    %v205 = vpop.permute.xlu0 %204
    %206 = vrot.lane.b32.xlu0 %v201, 31
    %v207 = vpop.permute.xlu0 %206
    %v210 = vadd.f32 %v184, %v205
    %v211 = vadd.f32 %v185, %v207
    %v212 = vadd.f32 %v210, %v193
    %v213 = vadd.f32 %v211, %v195
    %216 = vrot.lane.b32.xlu0 %v198, 97
    %v217 = vpop.permute.xlu0 %216
    %218 = vrot.lane.b32.xlu0 %v199, 97
    %v219 = vpop.permute.xlu0 %218
    %v222 = vrot.slane %v217, 7
    %v223 = vrot.slane %v219, 7
    %v224 = vsel %vm118, %v222, %v223
    %v225 = vsel %vm118, %v223, %v222
    %v226 = vmul.f32 %v225, %v30
    %v227 = vmul.f32 %v224, %v35
    %v228 = vrot.slane %v217, 1
    %v229 = vrot.slane %v219, 1
    %v230 = vsel %vm125, %v228, %v229
    %v231 = vsel %vm125, %v229, %v228
    %v232 = vmul.f32 %v230, %v39
    %v233 = vmul.f32 %v231, %v43
    %v234 = vmul.f32 %v198, 2.0
    %v235 = vmul.f32 %v199, 2.0
    %238 = vrot.lane.b32.xlu0 %v234, 97
    %v239 = vpop.permute.xlu0 %238
    %240 = vrot.lane.b32.xlu0 %v235, 97
    %v241 = vpop.permute.xlu0 %240
    %v244 = vadd.f32 %v226, %v239
    %v245 = vadd.f32 %v227, %v241
    %v246 = vadd.f32 %v244, %v232
    %v247 = vadd.f32 %v245, %v233
    %250 = vrot.lane.b32.xlu0 %v212, 97
    %v251 = vpop.permute.xlu0 %250
    %252 = vrot.lane.b32.xlu0 %v213, 97
    %v253 = vpop.permute.xlu0 %252
    %v256 = vrot.slane %v251, 7
    %v257 = vrot.slane %v253, 7
    %v258 = vsel %vm118, %v256, %v257
    %v259 = vsel %vm118, %v257, %v256
    %v260 = vmul.f32 %v259, %v30
    %v261 = vmul.f32 %v258, %v35
    %v262 = vrot.slane %v251, 1
    %v263 = vrot.slane %v253, 1
    %v264 = vsel %vm125, %v262, %v263
    %v265 = vsel %vm125, %v263, %v262
    %v266 = vmul.f32 %v264, %v39
    %v267 = vmul.f32 %v265, %v43
    %v268 = vsub.f32 0.0, %v260
    %v269 = vsub.f32 0.0, %v261
    %v270 = vadd.f32 %v268, %v266
    %v271 = vadd.f32 %v269, %v267
    %v272 = vand.u32 2147483647, %v246
    %v273 = vand.u32 2147483647, %v247
    %v274 = vand.u32 2147483647, %v270
    %v275 = vand.u32 2147483647, %v271
    %v276 = vsub.f32 %v272, %v168
    %v277 = vsub.f32 %v273, %v169
    %v278 = vsub.f32 %v274, %v170
    %v279 = vsub.f32 %v275, %v171
    %v280 = vmul.f32 %v276, %v276
    %v281 = vmul.f32 %v277, %v277
    %v282 = vmul.f32 %v278, %v278
    %v283 = vmul.f32 %v279, %v279
    %v284 = vadd.f32 %v280, %v282
    %v285 = vadd.f32 %v281, %v283
    %v286 = vld [vmem:[%s4] sm:$0xff]
    %v287 = vld [vmem:[%s4 + $0x8] sm:$0xff]
    %vm288 = vcmp.gt.f32.partialorder %v286, 0.0
    %vm289 = vcmp.gt.f32.partialorder %v287, 0.0
    %v290 = vsel %vm288, %v284, 0.0
    %v291 = vsel %vm289, %v285, 0.0
    %vm292 = vcmask 261120
    %v293 = vsel %vm292, %v290, 0.0
    %v294 = vsel %vm292, %v291, 0.0
    %v295 = vadd.f32 %v293, %v294
    %296 = vadd.xlane.f32.xlu0 %v295
    %v297 = vpop.xlane.xlu0 %296
    %v298 = vrot.slane %v297, 4
    %v299 = vadd.f32 %v297, %v298
    %v300 = vrot.slane %v299, 2
    %v301 = vadd.f32 %v299, %v300
    %v302 = vrot.slane %v301, 1
    %v303 = vadd.f32 %v301, %v302
    %s304 = vtos %v303
    %s305 = scalar_lea.smem [#allocation2], 0
    %306 = sst [smem:[%s305]] %s304
    // Predicated region
    $region22: #{gradient_difference_loss_w_attention.1} parent=1 // pred_check
      _
    $region23: #{gradient_difference_loss_w_attention.1} parent=1 // pred_check_branch
      %308 = sbr.rel (0) target = $region25
    $region24: #{gradient_difference_loss_w_attention.1} parent=1 // pred_region
      %s310 = ssub.s32 16, 16
      %311 = vsyncadd [#allocation3], %s310
      %314 = dma.smem_to_hbm [#allocation2], 16, %s5, [#allocation3]
    $region25: #{gradient_difference_loss_w_attention.1} parent=1 // pred_fallthru
      _
    // Predicated region
    $region26: #{gradient_difference_loss_w_attention.1} parent=1 // pred_check
      _
    $region27: #{gradient_difference_loss_w_attention.1} parent=1 // pred_check_branch
      %316 = sbr.rel (0) target = $region29
    $region28: #{gradient_difference_loss_w_attention.1} parent=1 // pred_region
      %317 = dma.done [#allocation3], 16
    $region29: #{gradient_difference_loss_w_attention.1} parent=1 // pred_fallthru
      _
    %318 = sfence
    %319 = vsyncpa [#allocation3], 1

</llo_original>
